<compile_context>
chip_gen: v7x
topology: tpu7x:2x2x1
jax: 0.10.0
libtpu: 0.0.40
codegen_flags: <defaults>
</compile_context>

<pallas_src>
import math
from functools import partial

import jax
import jax.numpy as jnp
from jax import lax
from jax.experimental import pallas as pl
from jax.experimental.pallas import tpu as pltpu


_LANE = 128           # vreg lane width
_SUBLANE_F32 = 8      # f32 sublane pack
_SUBLANE_16B = 16     # bf16/fp16 pack 2 rows per sublane


def _round_up(x, m):
    return (x + m - 1) // m * m


def _device_kind():
    try:
        return jax.devices()[0].device_kind.lower()
    except Exception:
        return ""


def _default_tile_m():
    kind = _device_kind()
    if "v6" in kind:
        return 512        # 128 MiB VMEM: bigger tiles amortize the ~0.35us/step
    # v5e/v5p: 256 halves step count vs 128 at negligible VMEM cost.
    # v7x (64 MiB VMEM, 2 TCs): 256 keeps both cores fed with headroom.
    return 256


def _vmem_budget_bytes():
    """~85% of physical VMEM (leave headroom for internal scratch/semaphores)."""
    cap = 0
    if hasattr(pltpu, "get_tpu_info"):
        try:
            cap = int(getattr(pltpu.get_tpu_info(), "vmem_capacity_bytes", 0))
        except Exception:
            cap = 0
    if cap <= 0:
        cap = (64 << 20) if "v7" in _device_kind() else (128 << 20)
    return int(0.85 * cap)


def _buffered_kw(n):
    """pipeline_mode kwarg for constant-index (weight) blocks, feature-checked."""
    if not hasattr(pl, "Buffered"):
        return {}
    try:
        pl.BlockSpec((8, _LANE), lambda i: (0, 0), pipeline_mode=pl.Buffered(n))
    except Exception:
        return {}
    return {"pipeline_mode": pl.Buffered(n)}


def _pick_hidden_chunk(h_p, max_chunk=512):
    for c in (max_chunk, 384, 256, 128):
        if c <= h_p and h_p % c == 0:
            return c
    return h_p


def prepare_mlp_params(w1, b1, w2, b2, *, param_dtype=None):
    """Pad the hidden dim to a multiple of 128 (and optionally cast) ONCE at
    init/update time.  Weights use [in, out] layout so the kernel does x @ W.
    Zero padding is exact: padded fc1 columns give h==0, GELU(0)==0, and the
    matching zero rows of fc2 contribute nothing."""
    C_in, H = w1.shape
    C_out = w2.shape[1]
    H_p = _round_up(H, _LANE)
    w1p = jnp.pad(w1, ((0, 0), (0, H_p - H)))
    b1p = jnp.pad(jnp.reshape(b1, (1, H)), ((0, 0), (0, H_p - H)))
    w2p = jnp.pad(w2, ((0, H_p - H), (0, 0)))
    b2p = jnp.reshape(b2, (1, C_out))
    if param_dtype is not None:
        w1p, b1p, w2p, b2p = (a.astype(param_dtype) for a in (w1p, b1p, w2p, b2p))
    return w1p, b1p, w2p, b2p


def _mlp_kernel(x_ref, w1_ref, b1_ref, w2_ref, b2_ref, o_ref, *,
                n_hc, hc, gelu_approximate, matmul_dtype):
    # x_ref:  (TM, C_in)     tile of tokens (full-extent channel dim)
    # w1_ref: (C_in, H_p)    fc1 weight ([in, out]), resident
    # b1_ref: (1, H_p)       fc1 bias
    # w2_ref: (H_p, C_out)   fc2 weight, resident
    # b2_ref: (1, C_out)     fc2 bias
    x = x_ref[...]
    if matmul_dtype is not None and x.dtype != matmul_dtype:
        x = x.astype(matmul_dtype)

    acc = jnp.zeros(o_ref.shape, jnp.float32)

    # Static (trace-time) loop over hidden-dim chunks: bounds the f32
    # intermediate to (TM, hc) instead of (TM, H_p).
    for c in range(n_hc):
        lo = c * hc
        w1c = w1_ref[:, lo:lo + hc]
        w2c = w2_ref[lo:lo + hc, :]
        if matmul_dtype is not None:
            w1c = w1c.astype(matmul_dtype)
            w2c = w2c.astype(matmul_dtype)

        # fc1 chunk (MXU, f32 accumulate) + bias
        h = jnp.dot(x, w1c, preferred_element_type=jnp.float32)
        h = h + b1_ref[:, lo:lo + hc].astype(jnp.float32)

        if gelu_approximate:
            h = jax.nn.gelu(h, approximate=True)   # tanh -> EUP slot
        else:
            # exact GELU (matches torch.nn.GELU default): 0.5*x*(1+erf(x/sqrt(2)))
            h = 0.5 * h * (1.0 + lax.erf(h * jnp.float32(0.7071067811865476)))

        # dropout p=0.0 -> identity

        # fc2 chunk (MXU) accumulated in f32
        h = h.astype(matmul_dtype) if matmul_dtype is not None else h.astype(w2c.dtype)
        acc = acc + jnp.dot(h, w2c, preferred_element_type=jnp.float32)

    o_ref[...] = (acc + b2_ref[...].astype(jnp.float32)).astype(o_ref.dtype)


def mlp_pallas(x, w1p, b1p, w2p, b2p, *, tile_m=None, hidden_chunk=None,
               gelu_approximate=False, matmul_dtype=None):
    """x: [..., C_in]; params ideally pre-padded via prepare_mlp_params
    (hidden dim a multiple of 128).  Returns fc2(gelu(fc1(x))) with drop p=0."""
    *lead, C_in = x.shape
    M = int(math.prod(lead)) if lead else 1
    x2d = jnp.reshape(x, (M, C_in))          # free: metadata-only reshape

    b1p = jnp.reshape(b1p, (1, -1))
    b2p = jnp.reshape(b2p, (1, -1))
    H_p = w1p.shape[1]
    C_out = w2p.shape[1]
    assert w1p.shape[0] == C_in and w2p.shape[0] == H_p

    if H_p % _LANE != 0:
        # Fallback only: callers should hoist this via prepare_mlp_params().
        H_new = _round_up(H_p, _LANE)
        w1p = jnp.pad(w1p, ((0, 0), (0, H_new - H_p)))
        b1p = jnp.pad(b1p, ((0, 0), (0, H_new - H_p)))
        w2p = jnp.pad(w2p, ((0, H_new - H_p), (0, 0)))
        H_p = H_new

    dtype = x.dtype
    itemsize = jnp.dtype(dtype).itemsize
    w_itemsize = jnp.dtype(w1p.dtype).itemsize
    sublane = _SUBLANE_F32 if itemsize == 4 else _SUBLANE_16B

    hc = hidden_chunk or _pick_hidden_chunk(H_p)
    assert H_p % hc == 0
    n_hc = H_p // hc

    if tile_m is None:
        tile_m = _default_tile_m()
    tile_m = max(sublane, _round_up(min(tile_m, _round_up(M, sublane)), sublane))
    # Keep >= ~8 grid steps before growing tiles (pipeline depth / v7x 2-TC split).
    while tile_m > 256 and pl.cdiv(M, tile_m) < 8:
        tile_m //= 2

    wkw = _buffered_kw(1)   # constant-index weights -> single-buffer if supported
    n_wbuf = 1 if wkw else 2
    weight_bytes = (n_wbuf * (C_in * H_p + H_p * C_out + H_p) + C_out) * w_itemsize

    def tile_bytes(tm):
        return (2 * tm * C_in * itemsize       # x tiles (double-buffered)
                + 2 * tm * C_out * itemsize    # out tiles (double-buffered)
                + 2 * tm * hc * 4              # hidden chunk + GELU temporary
                + tm * C_out * 4)              # f32 accumulator

    budget = _vmem_budget_bytes()
    while tile_m > sublane and weight_bytes + int(1.25 * tile_bytes(tile_m)) > budget:
        tile_m = max(sublane, _round_up(tile_m // 2, sublane))
    # TODO(synk): if the resident (padded) weights alone exceed the VMEM budget,
    # stream them with an extra "arbitrary" grid axis over H + VMEM accumulator.

    vmem_limit = min(budget, max(16 << 20,
                                 weight_bytes + int(1.25 * tile_bytes(tile_m))))

    grid = (pl.cdiv(M, tile_m),)

    cost = pl.CostEstimate(
        flops=2 * M * (C_in * H_p + H_p * C_out),
        transcendentals=M * H_p,
        bytes_accessed=(M * (C_in + C_out) * itemsize
                        + (C_in * H_p + H_p * C_out + H_p + C_out) * w_itemsize),
    )

    kernel = partial(_mlp_kernel, n_hc=n_hc, hc=hc,
                     gelu_approximate=gelu_approximate, matmul_dtype=matmul_dtype)

    in_specs = [
        # x tile: full-extent (possibly <128) channel dim -> no wrapper padding.
        # TODO(synk): if profiling shows exposed x DMA, sweep pl.Buffered(3) here.
        pl.BlockSpec((tile_m, C_in), lambda i: (i, 0)),
        pl.BlockSpec((C_in, H_p), lambda i: (0, 0), **wkw),    # w1 (resident)
        pl.BlockSpec((1, H_p), lambda i: (0, 0), **wkw),       # b1
        pl.BlockSpec((H_p, C_out), lambda i: (0, 0), **wkw),   # w2 (resident)
        pl.BlockSpec((1, C_out), lambda i: (0, 0), **wkw),     # b2
    ]

    out2d = pl.pallas_call(
        kernel,
        out_shape=jax.ShapeDtypeStruct((M, C_out), dtype),
        grid_spec=pltpu.PrefetchScalarGridSpec(
            num_scalar_prefetch=0,
            grid=grid,
            in_specs=in_specs,
            out_specs=pl.BlockSpec((tile_m, C_out), lambda i: (i, 0)),
        ),
        compiler_params=pltpu.CompilerParams(
            dimension_semantics=("parallel",),
            vmem_limit_bytes=int(vmem_limit),
        ),
        cost_estimate=cost,
    )(x2d, w1p, b1p, w2p, b2p)

    return jnp.reshape(out2d, (*lead, C_out))


def mlp_reference(x, w1, b1, w2, b2):
    h = jnp.dot(x, w1) + b1
    h = jax.nn.gelu(h, approximate=False)
    return jnp.dot(h, w2) + b2


if __name__ == "__main__":
    # Small shapes consistent with the module: [B, N, C] tokens, hidden = 2x.
    B, N = 2, 8
    in_features = 32
    hidden_features = 64
    out_features = 32

    key = jax.random.PRNGKey(0)
    kx, k1, k2, k3, k4 = jax.random.split(key, 5)

    x = jax.random.normal(kx, (B, N, in_features), dtype=jnp.float32)

    # Deterministic PyTorch-Linear-like init, stored as [in, out].
    lim1 = 1.0 / jnp.sqrt(in_features)
    w1 = jax.random.uniform(k1, (in_features, hidden_features), jnp.float32, -lim1, lim1)
    b1 = jax.random.uniform(k2, (hidden_features,), jnp.float32, -lim1, lim1)
    lim2 = 1.0 / jnp.sqrt(hidden_features)
    w2 = jax.random.uniform(k3, (hidden_features, out_features), jnp.float32, -lim2, lim2)
    b2 = jax.random.uniform(k4, (out_features,), jnp.float32, -lim2, lim2)

    ref = mlp_reference(x, w1, b1, w2, b2)

    # Exact path: f32 matmuls + erf GELU (matches torch.nn.GELU semantics).
    params_f32 = prepare_mlp_params(w1, b1, w2, b2)          # pad ONCE (hoisted)
    out = mlp_pallas(x, *params_f32)
    out = jax.block_until_ready(out)
    assert out.shape == (B, N, out_features)
    assert jnp.allclose(out, ref, atol=1e-5, rtol=1e-5), "f32 mismatch vs reference"

    # Fast path: bf16 MXU operands (f32 accumulation) + tanh GELU (EUP slot).
    params_bf16 = prepare_mlp_params(w1, b1, w2, b2, param_dtype=jnp.bfloat16)
    out_fast = mlp_pallas(x, *params_bf16,
                          matmul_dtype=jnp.bfloat16, gelu_approximate=True)
    out_fast = jax.block_until_ready(out_fast)
    assert jnp.allclose(out_fast.astype(jnp.float32), ref, atol=5e-2, rtol=5e-2), \
        "bf16 fast path diverged"

    print("KERNEL_OK")
</pallas_src>

<mosaic_0001>
module attributes {stable_mosaic.version = 11 : i64} {
  func.func @_mlp_kernel(%arg0: i32, %arg1: memref<16x32xf32, #tpu.memory_space<vmem>>, %arg2: memref<32x128xf32, #tpu.memory_space<vmem>>, %arg3: memref<1x128xf32, #tpu.memory_space<vmem>>, %arg4: memref<128x32xf32, #tpu.memory_space<vmem>>, %arg5: memref<1x32xf32, #tpu.memory_space<vmem>>, %arg6: memref<16x32xf32, #tpu.memory_space<vmem>>) attributes {dimension_semantics = [#tpu.dimension_semantics<parallel>], iteration_bounds = array<i64: 1>, scalar_prefetch = 0 : i64, scratch_operands = 0 : i64, tpu.core_type = #tpu.core_type<tc>, window_params = [{transform_indices = @transform_0, window_bounds = array<i64: 16, 32>}, {pipeline_mode = #tpu.pipeline_mode<synchronous>, transform_indices = @transform_1, window_bounds = array<i64: 32, 128>}, {pipeline_mode = #tpu.pipeline_mode<synchronous>, transform_indices = @transform_2, window_bounds = array<i64: 1, 128>}, {pipeline_mode = #tpu.pipeline_mode<synchronous>, transform_indices = @transform_3, window_bounds = array<i64: 128, 32>}, {pipeline_mode = #tpu.pipeline_mode<synchronous>, transform_indices = @transform_4, window_bounds = array<i64: 1, 32>}, {transform_indices = @transform_5, window_bounds = array<i64: 16, 32>}]} {
    %c0 = arith.constant 0 : index
    %c0_0 = arith.constant 0 : index
    %0 = vector.load %arg1[%c0, %c0_0] : memref<16x32xf32, #tpu.memory_space<vmem>>, vector<16x32xf32>
    %cst = arith.constant 0.000000e+00 : f32
    %1 = vector.broadcast %cst : f32 to vector<16x32xf32>
    %c0_1 = arith.constant 0 : index
    %c0_2 = arith.constant 0 : index
    %2 = vector.load %arg2[%c0_1, %c0_2] : memref<32x128xf32, #tpu.memory_space<vmem>>, vector<32x128xf32>
    %c0_3 = arith.constant 0 : index
    %c0_4 = arith.constant 0 : index
    %3 = vector.load %arg4[%c0_3, %c0_4] : memref<128x32xf32, #tpu.memory_space<vmem>>, vector<128x32xf32>
    %cst_5 = arith.constant dense<0.000000e+00> : vector<16x128xf32>
    %4 = tpu.matmul %0, %2, %cst_5 {dimension_numbers = #tpu.dot_dimension_numbers<[1], [0], [0], [1], [0, 0, 1, 1], [], []>} : vector<16x32xf32>, vector<32x128xf32>, vector<16x128xf32> -> vector<16x128xf32>
    %c0_6 = arith.constant 0 : index
    %c0_7 = arith.constant 0 : index
    %5 = vector.load %arg3[%c0_6, %c0_7] : memref<1x128xf32, #tpu.memory_space<vmem>>, vector<1x128xf32>
    %6 = vector.broadcast %5 : vector<1x128xf32> to vector<16x128xf32>
    %7 = arith.addf %4, %6 : vector<16x128xf32>
    %cst_8 = arith.constant 5.000000e-01 : f32
    %8 = vector.broadcast %cst_8 : f32 to vector<16x128xf32>
    %9 = arith.mulf %8, %7 : vector<16x128xf32>
    %cst_9 = arith.constant 0.707106769 : f32
    %10 = vector.broadcast %cst_9 : f32 to vector<16x128xf32>
    %11 = arith.mulf %7, %10 : vector<16x128xf32>
    %12 = math.erf %11 : vector<16x128xf32>
    %cst_10 = arith.constant 1.000000e+00 : f32
    %13 = vector.broadcast %cst_10 : f32 to vector<16x128xf32>
    %14 = arith.addf %13, %12 : vector<16x128xf32>
    %15 = arith.mulf %9, %14 : vector<16x128xf32>
    %cst_11 = arith.constant dense<0.000000e+00> : vector<16x32xf32>
    %16 = tpu.matmul %15, %3, %cst_11 {dimension_numbers = #tpu.dot_dimension_numbers<[1], [0], [0], [1], [0, 0, 1, 1], [], []>} : vector<16x128xf32>, vector<128x32xf32>, vector<16x32xf32> -> vector<16x32xf32>
    %17 = arith.addf %1, %16 : vector<16x32xf32>
    %c0_12 = arith.constant 0 : index
    %c0_13 = arith.constant 0 : index
    %18 = vector.load %arg5[%c0_12, %c0_13] : memref<1x32xf32, #tpu.memory_space<vmem>>, vector<1x32xf32>
    %19 = vector.broadcast %18 : vector<1x32xf32> to vector<16x32xf32>
    %20 = arith.addf %17, %19 : vector<16x32xf32>
    %c0_14 = arith.constant 0 : index
    %c0_15 = arith.constant 0 : index
    %21 = vector.load %arg6[%c0_14, %c0_15] : memref<16x32xf32, #tpu.memory_space<vmem>>, vector<16x32xf32>
    tpu.vector_store %arg6[%c0_14, %c0_15], %20 {strides = array<i32>} : memref<16x32xf32, #tpu.memory_space<vmem>>, vector<16x32xf32>,
    return
  }
  func.func @transform_0(%arg0: i32) -> (i32, i32) {
    %c0_i32 = arith.constant 0 : i32
    %c0_i32_0 = arith.constant 0 : i32
    return %arg0, %c0_i32 : i32, i32
  }
  func.func @transform_1(%arg0: i32) -> (i32, i32) {
    %c0_i32 = arith.constant 0 : i32
    %c0_i32_0 = arith.constant 0 : i32
    %c0_i32_1 = arith.constant 0 : i32
    return %c0_i32, %c0_i32_0 : i32, i32
  }
  func.func @transform_2(%arg0: i32) -> (i32, i32) {
    %c0_i32 = arith.constant 0 : i32
    %c0_i32_0 = arith.constant 0 : i32
    %c0_i32_1 = arith.constant 0 : i32
    return %c0_i32, %c0_i32_0 : i32, i32
  }
  func.func @transform_3(%arg0: i32) -> (i32, i32) {
    %c0_i32 = arith.constant 0 : i32
    %c0_i32_0 = arith.constant 0 : i32
    %c0_i32_1 = arith.constant 0 : i32
    return %c0_i32, %c0_i32_0 : i32, i32
  }
  func.func @transform_4(%arg0: i32) -> (i32, i32) {
    %c0_i32 = arith.constant 0 : i32
    %c0_i32_0 = arith.constant 0 : i32
    %c0_i32_1 = arith.constant 0 : i32
    return %c0_i32, %c0_i32_0 : i32, i32
  }
  func.func @transform_5(%arg0: i32) -> (i32, i32) {
    %c0_i32 = arith.constant 0 : i32
    %c0_i32_0 = arith.constant 0 : i32
    return %arg0, %c0_i32 : i32, i32
  }
}

</mosaic_0001>

<llo_original>
// kernel: tpu_custom_call.1
$region0: #{tpu_custom_call.1}
  #allocation0 [shape = 'u32[]', space=smem, size = 0x4, offset = 0x4, fixed_abs, tag = 'smem constant byte address 0x4 - core index']
  #allocation1 [shape = 'u32[144,128]{1,0:T(1,128)}', space=vmem, size = 0x12000, scoped, tag = 'internal scratch']
  %s0 = inlined_call_operand.vmem [shape: f32[16,32], index: 0, kind: input, shape index: {}]
  %s1 = inlined_call_operand.vmem [shape: f32[32,128], index: 1, kind: input, shape index: {}]
  %s2 = inlined_call_operand.vmem [shape: f32[1,128], index: 2, kind: input, shape index: {}]
  %s3 = inlined_call_operand.vmem [shape: f32[128,32], index: 3, kind: input, shape index: {}]
  %s4 = inlined_call_operand.vmem [shape: f32[1,32], index: 4, kind: input, shape index: {}]
  %s5 = inlined_call_operand.hbm [shape: f32[16,32], index: 5, kind: output, shape index: {}]
  %s6 = sld [smem:[#allocation0]]
  $region30: #{tpu_custom_call.1} parent=0
    _
  %s8 = ssub.s32 1, %s6
  %s9 = scalar_select 0, %s8, %s6
  $region1: #{tpu_custom_call.1} parent=0
    #allocation2 [shape = 'u8[8192]{0}', space=vmem, size = 0x2000, scoped, tag = 'output window, operand 0, single buffered']
    #allocation3 [shape = 's32[1]{0}', space=sflag, size = 0x4, scoped, tag = 'scoped memory for tpu_custom_call.1']
    %10 = vsyncpa [#allocation3], 0
    // Predicated region
    $region2: #{tpu_custom_call.1} parent=1 // pred_check
      _
    $region3: #{tpu_custom_call.1} parent=1 // pred_check_branch
      %12 = sbr.rel (0) target = $region5
    $region4: #{tpu_custom_call.1} parent=1 // pred_region
      _
    $region5: #{tpu_custom_call.1} parent=1 // pred_fallthru
      _
    // Predicated region
    $region6: #{tpu_custom_call.1} parent=1 // pred_check
      _
    $region7: #{tpu_custom_call.1} parent=1 // pred_check_branch
      %14 = sbr.rel (0) target = $region9
    $region8: #{tpu_custom_call.1} parent=1 // pred_region
      _
    $region9: #{tpu_custom_call.1} parent=1 // pred_fallthru
      _
    // Predicated region
    $region10: #{tpu_custom_call.1} parent=1 // pred_check
      _
    $region11: #{tpu_custom_call.1} parent=1 // pred_check_branch
      %16 = sbr.rel (0) target = $region13
    $region12: #{tpu_custom_call.1} parent=1 // pred_region
      _
    $region13: #{tpu_custom_call.1} parent=1 // pred_fallthru
      _
    // Predicated region
    $region14: #{tpu_custom_call.1} parent=1 // pred_check
      _
    $region15: #{tpu_custom_call.1} parent=1 // pred_check_branch
      %18 = sbr.rel (0) target = $region17
    $region16: #{tpu_custom_call.1} parent=1 // pred_region
      _
    $region17: #{tpu_custom_call.1} parent=1 // pred_fallthru
      _
    // Predicated region
    $region18: #{tpu_custom_call.1} parent=1 // pred_check
      _
    $region19: #{tpu_custom_call.1} parent=1 // pred_check_branch
      %20 = sbr.rel (0) target = $region21
    $region20: #{tpu_custom_call.1} parent=1 // pred_region
      _
    $region21: #{tpu_custom_call.1} parent=1 // pred_fallthru
      _
    %v21 = vld [vmem:[%s0] sm:$0xff]
    %v22 = vld [vmem:[%s0 + $0x8] sm:$0xff]
    %v23 = vld [vmem:[%s1] sm:$0xff]
    %v24 = vld [vmem:[%s1 + $0x8] sm:$0xff]
    %v25 = vld [vmem:[%s1 + $0x10] sm:$0xff]
    %v26 = vld [vmem:[%s1 + $0x18] sm:$0xff]
    %v27 = vld [vmem:[%s3] sm:$0xff]
    %v28 = vld [vmem:[%s3 + $0x8] sm:$0xff]
    %v29 = vld [vmem:[%s3 + $0x10] sm:$0xff]
    %v30 = vld [vmem:[%s3 + $0x18] sm:$0xff]
    %v31 = vld [vmem:[%s3 + $0x20] sm:$0xff]
    %v32 = vld [vmem:[%s3 + $0x28] sm:$0xff]
    %v33 = vld [vmem:[%s3 + $0x30] sm:$0xff]
    %v34 = vld [vmem:[%s3 + $0x38] sm:$0xff]
    %v35 = vld [vmem:[%s3 + $0x40] sm:$0xff]
    %v36 = vld [vmem:[%s3 + $0x48] sm:$0xff]
    %v37 = vld [vmem:[%s3 + $0x50] sm:$0xff]
    %v38 = vld [vmem:[%s3 + $0x58] sm:$0xff]
    %v39 = vld [vmem:[%s3 + $0x60] sm:$0xff]
    %v40 = vld [vmem:[%s3 + $0x68] sm:$0xff]
    %v41 = vld [vmem:[%s3 + $0x70] sm:$0xff]
    %v42 = vld [vmem:[%s3 + $0x78] sm:$0xff]
    %v43 = vld [vmem:[%s2] sm:$0x1]
    %v45 = vlaneseq
    %v46 = vshrl.u32 %v45, 7
    %v47 = vsub.s32 0, %v46
    %v48 = vrot.slane %v43, %v47
    %vm50 = vcmask 261120
    %v52 = vsel %vm50, %v21, 0
    %v55 = vsel %vm50, %v22, 0
    %57 = vmatprep.subr.mxu0 0.0
    %58 = vmatpush1.msra.mxu0 %v23
    %59 = vmatprep.subr.mxu0 0.0
    %60 = vmatpush1.msra.mxu0 %v24
    %61 = vmatprep.subr.mxu0 0.0
    %62 = vmatpush1.msra.mxu0 %v25
    %63 = vmatprep.subr.mxu0 0.0
    %64 = vmatpush1.msra.mxu0 %v26
    %65 = vmatprep.subr.mxu0 0.0
    %66 = vmatpush1.msra.mxu0 0.0
    %67 = vmatprep.subr.mxu0 0.0
    %68 = vmatpush1.msra.mxu0 0.0
    %69 = vmatprep.subr.mxu0 0.0
    %70 = vmatpush1.msra.mxu0 0.0
    %71 = vmatprep.subr.mxu0 0.0
    %72 = vmatpush1.msra.mxu0 0.0
    %73 = vmatprep.subr.mxu0 0.0
    %74 = vmatpush1.msra.mxu0 0.0
    %75 = vmatprep.subr.mxu0 0.0
    %76 = vmatpush1.msra.mxu0 0.0
    %77 = vmatprep.subr.mxu0 0.0
    %78 = vmatpush1.msra.mxu0 0.0
    %79 = vmatprep.subr.mxu0 0.0
    %80 = vmatpush1.msra.mxu0 0.0
    %81 = vmatprep.subr.mxu0 0.0
    %82 = vmatpush1.msra.mxu0 0.0
    %83 = vmatprep.subr.mxu0 0.0
    %84 = vmatpush1.msra.mxu0 0.0
    %85 = vmatprep.subr.mxu0 0.0
    %86 = vmatpush1.msra.mxu0 0.0
    %87 = vmatprep.subr.mxu0 0.0
    %88 = vmatpush1.msra.mxu0 0.0
    %89 = vmatprep.subr.mxu0 0.0
    %90 = vmatpush1.msra.mxu0 0.0
    %91 = vmatprep.subr.mxu0 0.0
    %92 = vmatpush1.msra.mxu0 0.0
    %93 = vmatprep.subr.mxu0 0.0
    %94 = vmatpush1.msra.mxu0 0.0
    %95 = vmatprep.subr.mxu0 0.0
    %96 = vmatpush1.msra.mxu0 0.0
    %97 = vmatprep.subr.mxu0 0.0
    %98 = vmatpush1.msra.mxu0 0.0
    %99 = vmatprep.subr.mxu0 0.0
    %100 = vmatpush1.msra.mxu0 0.0
    %101 = vmatprep.subr.mxu0 0.0
    %102 = vmatpush1.msra.mxu0 0.0
    %103 = vmatprep.subr.mxu0 0.0
    %104 = vmatpush1.msra.mxu0 0.0
    %105 = vmatprep.subr.mxu0 0.0
    %106 = vmatpush1.msra.mxu0 0.0
    %107 = vmatprep.subr.mxu0 0.0
    %108 = vmatpush1.msra.mxu0 0.0
    %109 = vmatprep.subr.mxu0 0.0
    %110 = vmatpush1.msra.mxu0 0.0
    %111 = vmatprep.subr.mxu0 0.0
    %112 = vmatpush1.msra.mxu0 0.0
    %113 = vmatprep.subr.mxu0 0.0
    %114 = vmatpush1.msra.mxu0 0.0
    %115 = vmatprep.subr.mxu0 0.0
    %116 = vmatpush1.msra.mxu0 0.0
    %117 = vmatprep.subr.mxu0 0.0
    %118 = vmatpush1.msra.mxu0 0.0
    %119 = vmatprep.subr.mxu0 0.0
    %120 = vmatpush1.msra.mxu0 0.0
    %121 = vmatprep.mubr.f32.mxu0 0.0
    %122 = vmatmul.mubr.f32.gmra.mrb[0].mxu0 %v52
    %v123 = vpop.f32.mrb[0].mxu0
    %v124 = vadd.f32 %v48, %v123
    %v125 = vpop.f32.mrb[0].mxu0
    %126 = vmatprep.mubr.f32.mxu0 0.0
    %127 = vmatmul.mubr.f32.gmra.mrb[0].mxu0 %v55
    %v128 = vpop.f32.mrb[0].mxu0
    %v129 = vadd.f32 %v48, %v128
    %v130 = vpop.f32.mrb[0].mxu0
    %131 = vdwg.mxu0
    %v132 = vmul.f32 %v124, 0.5
    %v133 = vmul.f32 %v129, 0.5
    %v134 = vmul.f32 %v124, 0.70710677
    %v135 = vmul.f32 %v129, 0.70710677
    %v136 = verf.f32.pop %v134
    %v137 = verf.f32.pop %v135
    %v138 = vadd.f32 %v136, 1.0
    %v139 = vadd.f32 %v137, 1.0
    %v140 = vmul.f32 %v132, %v138
    %v141 = vmul.f32 %v133, %v139
    %v142 = vld [vmem:[%s4] sm:$0x1]
    %v144 = vlaneseq
    %v145 = vshrl.u32 %v144, 7
    %v146 = vsub.s32 0, %v145
    %v147 = vrot.slane %v142, %v146
    %149 = vmatprep.subr.mxu0 0.0
    %150 = vmatpush1.msra.mxu0 %v27
    %151 = vmatprep.subr.mxu0 0.0
    %152 = vmatpush1.msra.mxu0 %v28
    %153 = vmatprep.subr.mxu0 0.0
    %154 = vmatpush1.msra.mxu0 %v29
    %155 = vmatprep.subr.mxu0 0.0
    %156 = vmatpush1.msra.mxu0 %v30
    %157 = vmatprep.subr.mxu0 0.0
    %158 = vmatpush1.msra.mxu0 %v31
    %159 = vmatprep.subr.mxu0 0.0
    %160 = vmatpush1.msra.mxu0 %v32
    %161 = vmatprep.subr.mxu0 0.0
    %162 = vmatpush1.msra.mxu0 %v33
    %163 = vmatprep.subr.mxu0 0.0
    %164 = vmatpush1.msra.mxu0 %v34
    %165 = vmatprep.subr.mxu0 0.0
    %166 = vmatpush1.msra.mxu0 %v35
    %167 = vmatprep.subr.mxu0 0.0
    %168 = vmatpush1.msra.mxu0 %v36
    %169 = vmatprep.subr.mxu0 0.0
    %170 = vmatpush1.msra.mxu0 %v37
    %171 = vmatprep.subr.mxu0 0.0
    %172 = vmatpush1.msra.mxu0 %v38
    %173 = vmatprep.subr.mxu0 0.0
    %174 = vmatpush1.msra.mxu0 %v39
    %175 = vmatprep.subr.mxu0 0.0
    %176 = vmatpush1.msra.mxu0 %v40
    %177 = vmatprep.subr.mxu0 0.0
    %178 = vmatpush1.msra.mxu0 %v41
    %179 = vmatprep.subr.mxu0 0.0
    %180 = vmatpush1.msra.mxu0 %v42
    %181 = vmatprep.subr.mxu0 0.0
    %182 = vmatpush1.msra.mxu0 0.0
    %183 = vmatprep.subr.mxu0 0.0
    %184 = vmatpush1.msra.mxu0 0.0
    %185 = vmatprep.subr.mxu0 0.0
    %186 = vmatpush1.msra.mxu0 0.0
    %187 = vmatprep.subr.mxu0 0.0
    %188 = vmatpush1.msra.mxu0 0.0
    %189 = vmatprep.subr.mxu0 0.0
    %190 = vmatpush1.msra.mxu0 0.0
    %191 = vmatprep.subr.mxu0 0.0
    %192 = vmatpush1.msra.mxu0 0.0
    %193 = vmatprep.subr.mxu0 0.0
    %194 = vmatpush1.msra.mxu0 0.0
    %195 = vmatprep.subr.mxu0 0.0
    %196 = vmatpush1.msra.mxu0 0.0
    %197 = vmatprep.subr.mxu0 0.0
    %198 = vmatpush1.msra.mxu0 0.0
    %199 = vmatprep.subr.mxu0 0.0
    %200 = vmatpush1.msra.mxu0 0.0
    %201 = vmatprep.subr.mxu0 0.0
    %202 = vmatpush1.msra.mxu0 0.0
    %203 = vmatprep.subr.mxu0 0.0
    %204 = vmatpush1.msra.mxu0 0.0
    %205 = vmatprep.subr.mxu0 0.0
    %206 = vmatpush1.msra.mxu0 0.0
    %207 = vmatprep.subr.mxu0 0.0
    %208 = vmatpush1.msra.mxu0 0.0
    %209 = vmatprep.subr.mxu0 0.0
    %210 = vmatpush1.msra.mxu0 0.0
    %211 = vmatprep.subr.mxu0 0.0
    %212 = vmatpush1.msra.mxu0 0.0
    %213 = vmatprep.mubr.f32.mxu0 0.0
    %214 = vmatmul.mubr.f32.gmra.mrb[0].mxu0 %v140
    %v215 = vpop.f32.mrb[0].mxu0
    %v216 = vadd.f32 %v147, %v215
    %v217 = vpop.f32.mrb[0].mxu0
    %218 = vmatprep.mubr.f32.mxu0 0.0
    %219 = vmatmul.mubr.f32.gmra.mrb[0].mxu0 %v141
    %v220 = vpop.f32.mrb[0].mxu0
    %v221 = vadd.f32 %v147, %v220
    %v222 = vpop.f32.mrb[0].mxu0
    %223 = vdwg.mxu0
    %224 = vst.msk [vmem:[#allocation2] sm:$0xff] %vm50, %v216
    %225 = vst.msk [vmem:[#allocation2 + $0x8] sm:$0xff] %vm50, %v221
    // Predicated region
    $region22: #{tpu_custom_call.1} parent=1 // pred_check
      _
    $region23: #{tpu_custom_call.1} parent=1 // pred_check_branch
      %227 = sbr.rel (0) target = $region25
    $region24: #{tpu_custom_call.1} parent=1 // pred_region
      %s229 = ssub.s32 256, 256
      %230 = vsyncadd [#allocation3], %s229
      %s231 = sshll.u32 [#allocation2], 4
      %s232 = int_to_ptr.vmem [resolvable:$true] %s231
      %237 = dma.vmem_to_hbm [thread:$0]  %s232, 256, %s5, [#allocation3], 128, 128, 8
    $region25: #{tpu_custom_call.1} parent=1 // pred_fallthru
      _
    // Predicated region
    $region26: #{tpu_custom_call.1} parent=1 // pred_check
      _
    $region27: #{tpu_custom_call.1} parent=1 // pred_check_branch
      %239 = sbr.rel (0) target = $region29
    $region28: #{tpu_custom_call.1} parent=1 // pred_region
      %240 = dma.done [#allocation3], 256
    $region29: #{tpu_custom_call.1} parent=1 // pred_fallthru
      _
    %241 = vsyncpa [#allocation3], 1

</llo_original>
